<compile_context>
chip_gen: v7x
topology: tpu7x:2x2x1
jax: 0.10.0
libtpu: 0.0.40
codegen_flags: <defaults>
</compile_context>

<pallas_src>
import math
from functools import partial

import jax
import jax.numpy as jnp
from jax.experimental import pallas as pl
from jax.experimental.pallas import tpu as pltpu

LANE = 128


def _round_up(x, m):
    return ((x + m - 1) // m) * m


def _vmem_budget_bytes():
    """Generation-aware scoped-VMEM budget (leave ~40% headroom)."""
    phys = None
    try:
        phys = getattr(pltpu.get_tpu_info(), "vmem_capacity_bytes", None)
    except Exception:
        phys = None
    if not phys:
        phys = 64 * 1024 * 1024  # assume the tightest generation (v7x) if unknown
    return int(phys * 0.6)


def _pick_batch_tile(B, L_Q, L_KV, d_model_p, d_kp, d_vp, budget_bytes):
    """Largest batch tile TB such that B % TB == 0, flattened (TB*L, .) blocks
    stay 8-sublane aligned, and the double-buffered blocks + f32 intermediates
    fit the VMEM budget.  Prefers an even grid-step count when >1 so both v7x
    TensorCores get equal work."""

    def fits(tb):
        rows_q, rows_kv = tb * L_Q, tb * L_KV
        in_bytes = 2 * 4 * (rows_q + 2 * rows_kv) * d_model_p          # 2x-buffered q/k/v
        out_bytes = 2 * 4 * rows_q * d_vp                              # 2x-buffered out
        w_bytes = 2 * 4 * (d_model_p + 1) * (2 * d_kp + d_vp)          # 2x-buffered W/b
        interm = 4 * (rows_q * d_kp + rows_kv * (d_kp + d_vp)          # Q, K, V (f32)
                      + 2 * tb * L_Q * L_KV                            # s and e/p
                      + rows_q * d_vp)                                 # out (f32)
        return in_bytes + out_bytes + w_bytes + interm <= budget_bytes

    aligned = [tb for tb in range(1, B + 1)
               if B % tb == 0 and (tb * L_Q) % 8 == 0 and (tb * L_KV) % 8 == 0]
    if not aligned:
        return B  # single step over the whole batch: block == full array, always legal
    fitting = [tb for tb in aligned if fits(tb)]
    if not fitting:
        return min(aligned)
    best = max(fitting)
    steps = B // best
    if steps > 1 and steps % 2 == 1:          # balance the two v7x TensorCores
        even = [tb for tb in fitting if (B // tb) % 2 == 0]
        if even:
            best = max(even)
    return best


def _attn_kernel(q_ref, k_ref, v_ref,
                 wq_ref, bq_ref, wk_ref, bk_ref, wv_ref, bv_ref,
                 o_ref, *, scale, tb, l_q, l_kv):
    # --- Projections: one (TB*L, d_model_p) @ (d_model_p, 128) MXU matmul each,
    #     f32 accumulate, bias broadcast over rows. ---
    Q = jnp.dot(q_ref[...], wq_ref[...], preferred_element_type=jnp.float32) + bq_ref[...]
    K = jnp.dot(k_ref[...], wk_ref[...], preferred_element_type=jnp.float32) + bk_ref[...]
    V = jnp.dot(v_ref[...], wv_ref[...], preferred_element_type=jnp.float32) + bv_ref[...]

    # Fold 1/sqrt(d_k) into Q (d_k lanes/row) instead of scaling the (L_Q, L_KV) scores.
    Q = Q * scale

    d_kp = Q.shape[-1]
    d_vp = V.shape[-1]

    # Layout-free when L % 8 == 0 (guaranteed by the tile picker except in the
    # block==full-array fallback, where a relayout is a perf-only issue).
    Q3 = Q.reshape(tb, l_q, d_kp)
    K3 = K.reshape(tb, l_kv, d_kp)
    V3 = V.reshape(tb, l_kv, d_vp)

    # scores: batched contraction of the last dims (no explicit K transpose).
    s = jnp.einsum('bqd,bkd->bqk', Q3, K3, preferred_element_type=jnp.float32)

    # numerically-stable softmax along the KV axis (exact divide: the approx
    # EUP reciprocal previously blew the 1e-3 tolerance).
    s_max = jnp.max(s, axis=-1, keepdims=True)
    e = jnp.exp(s - s_max)
    denom = jnp.sum(e, axis=-1, keepdims=True)
    p = e / denom

    out = jnp.einsum('bqk,bkd->bqd', p, V3, preferred_element_type=jnp.float32)
    o_ref[...] = out.astype(o_ref.dtype)  # single unmasked lane-dense store


def prepare_params(params):
    """Pad/transform weights once (outside the per-call path).

    Weights come in as (d_in, d_out); they are zero-padded so d_model -> d_model_p
    and d_k/d_v -> multiples of 128 lanes.
    """
    wq, bq, wk, bk, wv, bv = params
    d_model, d_k = wq.shape
    d_v = wv.shape[1]
    d_model_p = _round_up(d_model, LANE)
    d_kp = _round_up(d_k, LANE)
    d_vp = _round_up(d_v, LANE)

    def pad_w(w, dp):
        return jnp.pad(w, ((0, d_model_p - d_model), (0, dp - w.shape[1])))

    def pad_b(b, dp):
        return jnp.pad(b, ((0, 0), (0, dp - b.shape[1])))

    prepared = dict(
        wq=pad_w(wq, d_kp), bq=pad_b(bq, d_kp),
        wk=pad_w(wk, d_kp), bk=pad_b(bk, d_kp),
        wv=pad_w(wv, d_vp), bv=pad_b(bv, d_vp),
        d_model=d_model, d_model_p=d_model_p,
        d_k=d_k, d_kp=d_kp, d_v=d_v, d_vp=d_vp,
    )
    return prepared


def single_head_attention(querys, keys, values, prepared):
    """querys: (B, L_Q, d_model), keys/values: (B, L_KV, d_model)."""
    B, L_Q, d_model = querys.shape
    _, L_KV, _ = keys.shape
    assert d_model == prepared["d_model"]

    d_model_p = prepared["d_model_p"]
    d_k, d_kp = prepared["d_k"], prepared["d_kp"]
    d_v, d_vp = prepared["d_v"], prepared["d_vp"]
    scale = 1.0 / math.sqrt(d_k)  # PyTorch scales by sqrt of the *projected* d_k

    budget = _vmem_budget_bytes()
    TB = _pick_batch_tile(B, L_Q, L_KV, d_model_p, d_kp, d_vp, budget)
    grid = (B // TB,)

    # Flatten batch*seq and pad d_model to 128 lanes (zeros contribute 0 to the
    # projections; under jit XLA folds these pads into the producers).
    pad_dm = d_model_p - d_model
    q2 = jnp.pad(querys, ((0, 0), (0, 0), (0, pad_dm))).reshape(B * L_Q, d_model_p)
    k2 = jnp.pad(keys, ((0, 0), (0, 0), (0, pad_dm))).reshape(B * L_KV, d_model_p)
    v2 = jnp.pad(values, ((0, 0), (0, 0), (0, pad_dm))).reshape(B * L_KV, d_model_p)

    kernel = partial(_attn_kernel, scale=scale, tb=TB, l_q=L_Q, l_kv=L_KV)

    # Advisory cost estimate so XLA schedules around the custom call correctly.
    proj_flops = 2 * B * (L_Q * d_model * d_k + L_KV * d_model * d_k + L_KV * d_model * d_v)
    attn_flops = 2 * B * (L_Q * L_KV * d_k + L_Q * L_KV * d_v)
    bytes_accessed = 4 * (q2.size + k2.size + v2.size
                          + (d_model_p + 1) * (2 * d_kp + d_vp)
                          + B * L_Q * d_vp)
    cost = pl.CostEstimate(flops=int(proj_flops + attn_flops),
                           transcendentals=int(B * L_Q * L_KV),
                           bytes_accessed=int(bytes_accessed))

    out = pl.pallas_call(
        kernel,
        out_shape=jax.ShapeDtypeStruct((B, L_Q, d_vp), querys.dtype),
        grid_spec=pltpu.PrefetchScalarGridSpec(
            num_scalar_prefetch=0,
            grid=grid,
            in_specs=[
                pl.BlockSpec((TB * L_Q, d_model_p), lambda i: (i, 0)),
                pl.BlockSpec((TB * L_KV, d_model_p), lambda i: (i, 0)),
                pl.BlockSpec((TB * L_KV, d_model_p), lambda i: (i, 0)),
                pl.BlockSpec((d_model_p, d_kp), lambda i: (0, 0)),
                pl.BlockSpec((1, d_kp), lambda i: (0, 0)),
                pl.BlockSpec((d_model_p, d_kp), lambda i: (0, 0)),
                pl.BlockSpec((1, d_kp), lambda i: (0, 0)),
                pl.BlockSpec((d_model_p, d_vp), lambda i: (0, 0)),
                pl.BlockSpec((1, d_vp), lambda i: (0, 0)),
            ],
            out_specs=pl.BlockSpec((TB, L_Q, d_vp), lambda i: (i, 0, 0)),
        ),
        compiler_params=pltpu.CompilerParams(
            dimension_semantics=("parallel",),
            vmem_limit_bytes=int(budget)),
        cost_estimate=cost,
    )(q2, k2, v2,
      prepared["wq"], prepared["bq"],
      prepared["wk"], prepared["bk"],
      prepared["wv"], prepared["bv"])

    # Drop the zero lane padding on d_v.
    return out[..., :d_v]


def init_params(key, d_model, d_k, d_v, dtype=jnp.float32):
    """Deterministic init mimicking nn.Linear's uniform(-1/sqrt(in), 1/sqrt(in)).
    Weights are stored already transposed: (d_in, d_out)."""
    ks = jax.random.split(key, 6)
    bound = 1.0 / math.sqrt(d_model)
    wq = jax.random.uniform(ks[0], (d_model, d_k), dtype, -bound, bound)
    bq = jax.random.uniform(ks[1], (1, d_k), dtype, -bound, bound)
    wk = jax.random.uniform(ks[2], (d_model, d_k), dtype, -bound, bound)
    bk = jax.random.uniform(ks[3], (1, d_k), dtype, -bound, bound)
    wv = jax.random.uniform(ks[4], (d_model, d_v), dtype, -bound, bound)
    bv = jax.random.uniform(ks[5], (1, d_v), dtype, -bound, bound)
    return (wq, bq, wk, bk, wv, bv)


def reference(querys, keys, values, params):
    wq, bq, wk, bk, wv, bv = params
    Q = querys @ wq + bq
    K = keys @ wk + bk
    V = values @ wv + bv
    s = jnp.einsum("bqd,bkd->bqk", Q, K) / math.sqrt(Q.shape[-1])
    p = jax.nn.softmax(s, axis=-1)
    return jnp.einsum("bqk,bkd->bqd", p, V)


if __name__ == "__main__":
    B, L_Q, L_KV = 4, 8, 8
    d_model, d_k, d_v = 32, 16, 16

    key = jax.random.PRNGKey(0)
    kq, kk, kv, kp = jax.random.split(key, 4)

    querys = jax.random.normal(kq, (B, L_Q, d_model), jnp.float32)
    keys = jax.random.normal(kk, (B, L_KV, d_model), jnp.float32)
    values = jax.random.normal(kv, (B, L_KV, d_model), jnp.float32)
    params = init_params(kp, d_model, d_k, d_v)

    prepared = prepare_params(params)  # one-time weight pad (outside per-call path)
    out = single_head_attention(querys, keys, values, prepared)
    out = jax.block_until_ready(out)

    ref = reference(querys, keys, values, params)
    assert out.shape == (B, L_Q, d_v), out.shape
    err = jnp.max(jnp.abs(out - ref))
    assert jnp.allclose(out, ref, atol=1e-4, rtol=1e-4), f"max abs err {err}"

    print("KERNEL_OK")
</pallas_src>

<mosaic_0001>
module attributes {stable_mosaic.version = 11 : i64} {
  func.func @_attn_kernel(%arg0: i32, %arg1: memref<32x128xf32, #tpu.memory_space<vmem>>, %arg2: memref<32x128xf32, #tpu.memory_space<vmem>>, %arg3: memref<32x128xf32, #tpu.memory_space<vmem>>, %arg4: memref<128x128xf32, #tpu.memory_space<vmem>>, %arg5: memref<1x128xf32, #tpu.memory_space<vmem>>, %arg6: memref<128x128xf32, #tpu.memory_space<vmem>>, %arg7: memref<1x128xf32, #tpu.memory_space<vmem>>, %arg8: memref<128x128xf32, #tpu.memory_space<vmem>>, %arg9: memref<1x128xf32, #tpu.memory_space<vmem>>, %arg10: memref<4x8x128xf32, #tpu.memory_space<vmem>>) attributes {dimension_semantics = [#tpu.dimension_semantics<parallel>], iteration_bounds = array<i64: 1>, scalar_prefetch = 0 : i64, scratch_operands = 0 : i64, tpu.core_type = #tpu.core_type<tc>, window_params = [{transform_indices = @transform_0, window_bounds = array<i64: 32, 128>}, {transform_indices = @transform_1, window_bounds = array<i64: 32, 128>}, {transform_indices = @transform_2, window_bounds = array<i64: 32, 128>}, {pipeline_mode = #tpu.pipeline_mode<synchronous>, transform_indices = @transform_3, window_bounds = array<i64: 128, 128>}, {pipeline_mode = #tpu.pipeline_mode<synchronous>, transform_indices = @transform_4, window_bounds = array<i64: 1, 128>}, {pipeline_mode = #tpu.pipeline_mode<synchronous>, transform_indices = @transform_5, window_bounds = array<i64: 128, 128>}, {pipeline_mode = #tpu.pipeline_mode<synchronous>, transform_indices = @transform_6, window_bounds = array<i64: 1, 128>}, {pipeline_mode = #tpu.pipeline_mode<synchronous>, transform_indices = @transform_7, window_bounds = array<i64: 128, 128>}, {pipeline_mode = #tpu.pipeline_mode<synchronous>, transform_indices = @transform_8, window_bounds = array<i64: 1, 128>}, {transform_indices = @transform_9, window_bounds = array<i64: 4, 8, 128>}]} {
    %c0 = arith.constant 0 : index
    %c0_0 = arith.constant 0 : index
    %0 = vector.load %arg1[%c0, %c0_0] : memref<32x128xf32, #tpu.memory_space<vmem>>, vector<32x128xf32>
    %c0_1 = arith.constant 0 : index
    %c0_2 = arith.constant 0 : index
    %1 = vector.load %arg4[%c0_1, %c0_2] : memref<128x128xf32, #tpu.memory_space<vmem>>, vector<128x128xf32>
    %cst = arith.constant dense<0.000000e+00> : vector<32x128xf32>
    %2 = tpu.matmul %0, %1, %cst {dimension_numbers = #tpu.dot_dimension_numbers<[1], [0], [0], [1], [0, 0, 1, 1], [], []>} : vector<32x128xf32>, vector<128x128xf32>, vector<32x128xf32> -> vector<32x128xf32>
    %c0_3 = arith.constant 0 : index
    %c0_4 = arith.constant 0 : index
    %3 = vector.load %arg5[%c0_3, %c0_4] : memref<1x128xf32, #tpu.memory_space<vmem>>, vector<1x128xf32>
    %4 = vector.broadcast %3 : vector<1x128xf32> to vector<32x128xf32>
    %5 = arith.addf %2, %4 : vector<32x128xf32>
    %c0_5 = arith.constant 0 : index
    %c0_6 = arith.constant 0 : index
    %6 = vector.load %arg2[%c0_5, %c0_6] : memref<32x128xf32, #tpu.memory_space<vmem>>, vector<32x128xf32>
    %c0_7 = arith.constant 0 : index
    %c0_8 = arith.constant 0 : index
    %7 = vector.load %arg6[%c0_7, %c0_8] : memref<128x128xf32, #tpu.memory_space<vmem>>, vector<128x128xf32>
    %cst_9 = arith.constant dense<0.000000e+00> : vector<32x128xf32>
    %8 = tpu.matmul %6, %7, %cst_9 {dimension_numbers = #tpu.dot_dimension_numbers<[1], [0], [0], [1], [0, 0, 1, 1], [], []>} : vector<32x128xf32>, vector<128x128xf32>, vector<32x128xf32> -> vector<32x128xf32>
    %c0_10 = arith.constant 0 : index
    %c0_11 = arith.constant 0 : index
    %9 = vector.load %arg7[%c0_10, %c0_11] : memref<1x128xf32, #tpu.memory_space<vmem>>, vector<1x128xf32>
    %10 = vector.broadcast %9 : vector<1x128xf32> to vector<32x128xf32>
    %11 = arith.addf %8, %10 : vector<32x128xf32>
    %c0_12 = arith.constant 0 : index
    %c0_13 = arith.constant 0 : index
    %12 = vector.load %arg3[%c0_12, %c0_13] : memref<32x128xf32, #tpu.memory_space<vmem>>, vector<32x128xf32>
    %c0_14 = arith.constant 0 : index
    %c0_15 = arith.constant 0 : index
    %13 = vector.load %arg8[%c0_14, %c0_15] : memref<128x128xf32, #tpu.memory_space<vmem>>, vector<128x128xf32>
    %cst_16 = arith.constant dense<0.000000e+00> : vector<32x128xf32>
    %14 = tpu.matmul %12, %13, %cst_16 {dimension_numbers = #tpu.dot_dimension_numbers<[1], [0], [0], [1], [0, 0, 1, 1], [], []>} : vector<32x128xf32>, vector<128x128xf32>, vector<32x128xf32> -> vector<32x128xf32>
    %c0_17 = arith.constant 0 : index
    %c0_18 = arith.constant 0 : index
    %15 = vector.load %arg9[%c0_17, %c0_18] : memref<1x128xf32, #tpu.memory_space<vmem>>, vector<1x128xf32>
    %16 = vector.broadcast %15 : vector<1x128xf32> to vector<32x128xf32>
    %17 = arith.addf %14, %16 : vector<32x128xf32>
    %cst_19 = arith.constant 2.500000e-01 : f32
    %18 = vector.broadcast %cst_19 : f32 to vector<32x128xf32>
    %19 = arith.mulf %5, %18 : vector<32x128xf32>
    %20 = vector.shape_cast %19 : vector<32x128xf32> to vector<4x8x128xf32>
    %21 = vector.shape_cast %11 : vector<32x128xf32> to vector<4x8x128xf32>
    %22 = vector.shape_cast %17 : vector<32x128xf32> to vector<4x8x128xf32>
    "tpu.trace_start"() <{level = 10 : i32, message = "bqd,bkd->bqk"}> : () -> ()
    %cst_20 = arith.constant dense<0.000000e+00> : vector<4x8x8xf32>
    %23 = tpu.matmul %20, %21, %cst_20 {dimension_numbers = #tpu.dot_dimension_numbers<[2], [2], [1], [1], [0, 0, 0, 1, 1, 1], [0], [0]>} : vector<4x8x128xf32>, vector<4x8x128xf32>, vector<4x8x8xf32> -> vector<4x8x8xf32>
    "tpu.trace_stop"() : () -> ()
    %cst_21 = arith.constant dense<0xFF800000> : vector<4x8xf32>
    %24 = vector.multi_reduction <maximumf>, %23, %cst_21 [2] : vector<4x8x8xf32> to vector<4x8xf32>
    %25 = vector.shape_cast %24 : vector<4x8xf32> to vector<4x8x1xf32>
    %26 = vector.broadcast %25 : vector<4x8x1xf32> to vector<4x8x8xf32>
    %27 = arith.subf %23, %26 : vector<4x8x8xf32>
    %28 = math.exp %27 : vector<4x8x8xf32>
    %cst_22 = arith.constant dense<0.000000e+00> : vector<4x8xf32>
    %29 = vector.multi_reduction <add>, %28, %cst_22 [2] : vector<4x8x8xf32> to vector<4x8xf32>
    %30 = vector.shape_cast %29 : vector<4x8xf32> to vector<4x8x1xf32>
    %31 = vector.broadcast %30 : vector<4x8x1xf32> to vector<4x8x8xf32>
    %32 = arith.divf %28, %31 : vector<4x8x8xf32>
    "tpu.trace_start"() <{level = 10 : i32, message = "bqk,bkd->bqd"}> : () -> ()
    %cst_23 = arith.constant dense<0.000000e+00> : vector<4x8x128xf32>
    %33 = tpu.matmul %32, %22, %cst_23 {dimension_numbers = #tpu.dot_dimension_numbers<[2], [1], [1], [2], [0, 0, 0, 1, 1, 2], [0], [0]>} : vector<4x8x8xf32>, vector<4x8x128xf32>, vector<4x8x128xf32> -> vector<4x8x128xf32>
    "tpu.trace_stop"() : () -> ()
    %c0_24 = arith.constant 0 : index
    %c0_25 = arith.constant 0 : index
    %c0_26 = arith.constant 0 : index
    %34 = vector.load %arg10[%c0_24, %c0_25, %c0_26] : memref<4x8x128xf32, #tpu.memory_space<vmem>>, vector<4x8x128xf32>
    tpu.vector_store %arg10[%c0_24, %c0_25, %c0_26], %33 {strides = array<i32>} : memref<4x8x128xf32, #tpu.memory_space<vmem>>, vector<4x8x128xf32>,
    return
  }
  func.func @transform_0(%arg0: i32) -> (i32, i32) {
    %c0_i32 = arith.constant 0 : i32
    %c0_i32_0 = arith.constant 0 : i32
    return %arg0, %c0_i32 : i32, i32
  }
  func.func @transform_1(%arg0: i32) -> (i32, i32) {
    %c0_i32 = arith.constant 0 : i32
    %c0_i32_0 = arith.constant 0 : i32
    return %arg0, %c0_i32 : i32, i32
  }
  func.func @transform_2(%arg0: i32) -> (i32, i32) {
    %c0_i32 = arith.constant 0 : i32
    %c0_i32_0 = arith.constant 0 : i32
    return %arg0, %c0_i32 : i32, i32
  }
  func.func @transform_3(%arg0: i32) -> (i32, i32) {
    %c0_i32 = arith.constant 0 : i32
    %c0_i32_0 = arith.constant 0 : i32
    %c0_i32_1 = arith.constant 0 : i32
    return %c0_i32, %c0_i32_0 : i32, i32
  }
  func.func @transform_4(%arg0: i32) -> (i32, i32) {
    %c0_i32 = arith.constant 0 : i32
    %c0_i32_0 = arith.constant 0 : i32
    %c0_i32_1 = arith.constant 0 : i32
    return %c0_i32, %c0_i32_0 : i32, i32
  }
  func.func @transform_5(%arg0: i32) -> (i32, i32) {
    %c0_i32 = arith.constant 0 : i32
    %c0_i32_0 = arith.constant 0 : i32
    %c0_i32_1 = arith.constant 0 : i32
    return %c0_i32, %c0_i32_0 : i32, i32
  }
  func.func @transform_6(%arg0: i32) -> (i32, i32) {
    %c0_i32 = arith.constant 0 : i32
    %c0_i32_0 = arith.constant 0 : i32
    %c0_i32_1 = arith.constant 0 : i32
    return %c0_i32, %c0_i32_0 : i32, i32
  }
  func.func @transform_7(%arg0: i32) -> (i32, i32) {
    %c0_i32 = arith.constant 0 : i32
    %c0_i32_0 = arith.constant 0 : i32
    %c0_i32_1 = arith.constant 0 : i32
    return %c0_i32, %c0_i32_0 : i32, i32
  }
  func.func @transform_8(%arg0: i32) -> (i32, i32) {
    %c0_i32 = arith.constant 0 : i32
    %c0_i32_0 = arith.constant 0 : i32
    %c0_i32_1 = arith.constant 0 : i32
    return %c0_i32, %c0_i32_0 : i32, i32
  }
  func.func @transform_9(%arg0: i32) -> (i32, i32, i32) {
    %c0_i32 = arith.constant 0 : i32
    %c0_i32_0 = arith.constant 0 : i32
    %c0_i32_1 = arith.constant 0 : i32
    return %arg0, %c0_i32, %c0_i32_0 : i32, i32, i32
  }
}

</mosaic_0001>

<llo_original>
// kernel: tpu_custom_call.1
$region0: #{tpu_custom_call.1}
  #allocation0 [shape = 'u32[]', space=smem, size = 0x4, offset = 0x4, fixed_abs, tag = 'smem constant byte address 0x4 - core index']
  #allocation1 [shape = 'u32[144,128]{1,0:T(1,128)}', space=vmem, size = 0x12000, scoped, tag = 'internal scratch']
  %s0 = inlined_call_operand.hbm [shape: f32[32,128], index: 0, kind: input, shape index: {}]
  %s1 = inlined_call_operand.hbm [shape: f32[32,128], index: 1, kind: input, shape index: {}]
  %s2 = inlined_call_operand.hbm [shape: f32[32,128], index: 2, kind: input, shape index: {}]
  %s3 = inlined_call_operand.hbm [shape: f32[128,128], index: 3, kind: input, shape index: {}]
  %s4 = inlined_call_operand.vmem [shape: f32[1,128], index: 4, kind: input, shape index: {}]
  %s5 = inlined_call_operand.hbm [shape: f32[128,128], index: 5, kind: input, shape index: {}]
  %s6 = inlined_call_operand.vmem [shape: f32[1,128], index: 6, kind: input, shape index: {}]
  %s7 = inlined_call_operand.hbm [shape: f32[128,128], index: 7, kind: input, shape index: {}]
  %s8 = inlined_call_operand.vmem [shape: f32[1,128], index: 8, kind: input, shape index: {}]
  %s9 = inlined_call_operand.hbm [shape: f32[4,8,128], index: 9, kind: output, shape index: {}]
  %s10 = sld [smem:[#allocation0]]
  $region70: #{tpu_custom_call.1} parent=0
    _
  %s12 = ssub.s32 1, %s10
  %s13 = scalar_select 0, %s12, %s10
  $region1: #{tpu_custom_call.1} parent=0
    #allocation2 [shape = 'u8[16384]{0}', space=vmem, size = 0x4000, scoped, tag = 'input window, operand 0, single buffered']
    #allocation3 [shape = 's32[1]{0}', space=sflag, size = 0x4, scoped, tag = 'scoped memory for tpu_custom_call.1']
    #allocation4 [shape = 's32[1]{0}', space=sflag, size = 0x4, scoped, tag = 'scoped memory for tpu_custom_call.1']
    #allocation5 [shape = 'u8[16384]{0}', space=vmem, size = 0x4000, scoped, tag = 'input window, operand 1, single buffered']
    #allocation6 [shape = 's32[1]{0}', space=sflag, size = 0x4, scoped, tag = 'scoped memory for tpu_custom_call.1']
    #allocation7 [shape = 'u8[16384]{0}', space=vmem, size = 0x4000, scoped, tag = 'input window, operand 2, single buffered']
    #allocation8 [shape = 'u8[65536]{0}', space=vmem, size = 0x10000, scoped, tag = 'input window, operand 3, single buffered']
    #allocation9 [shape = 's32[1]{0}', space=sflag, size = 0x4, scoped, tag = 'scoped memory for tpu_custom_call.1']
    #allocation10 [shape = 'u8[65536]{0}', space=vmem, size = 0x10000, scoped, tag = 'input window, operand 5, single buffered']
    #allocation11 [shape = 'u8[65536]{0}', space=vmem, size = 0x10000, scoped, tag = 'input window, operand 7, single buffered']
    #allocation12 [shape = 's32[1]{0}', space=sflag, size = 0x4, scoped, tag = 'scoped memory for tpu_custom_call.1']
    #allocation13 [shape = 'u8[16384]{0}', space=vmem, size = 0x4000, scoped, tag = 'output window, operand 0, single buffered']
    %14 = vsyncpa [#allocation3], 0
    %15 = vsyncpa [#allocation6], 0
    %16 = vsyncpa [#allocation9], 0
    %17 = vsyncpa [#allocation12], 0
    %18 = vsyncpa [#allocation4], 0
    // Predicated region
    $region2: #{tpu_custom_call.1} parent=1 // pred_check
      _
    $region3: #{tpu_custom_call.1} parent=1 // pred_check_branch
      %20 = sbr.rel (0) target = $region5
    $region4: #{tpu_custom_call.1} parent=1 // pred_region
      %s22 = ssub.s32 512, 512
      %23 = vsyncadd [#allocation3], %s22
      %s24 = sshll.u32 [#allocation2], 4
      %s25 = int_to_ptr.vmem [resolvable:$true] %s24
      %30 = dma.hbm_to_vmem [thread:$0]  %s0, 512, %s25, [#allocation3], 128, 128, 8
    $region5: #{tpu_custom_call.1} parent=1 // pred_fallthru
      _
    // Predicated region
    $region6: #{tpu_custom_call.1} parent=1 // pred_check
      _
    $region7: #{tpu_custom_call.1} parent=1 // pred_check_branch
      %32 = sbr.rel (0) target = $region9
    $region8: #{tpu_custom_call.1} parent=1 // pred_region
      %s34 = ssub.s32 512, 512
      %35 = vsyncadd [#allocation6], %s34
      %s36 = sshll.u32 [#allocation5], 4
      %s37 = int_to_ptr.vmem [resolvable:$true] %s36
      %42 = dma.hbm_to_vmem [thread:$0]  %s1, 512, %s37, [#allocation6], 128, 128, 8
    $region9: #{tpu_custom_call.1} parent=1 // pred_fallthru
      _
    // Predicated region
    $region10: #{tpu_custom_call.1} parent=1 // pred_check
      _
    $region11: #{tpu_custom_call.1} parent=1 // pred_check_branch
      %44 = sbr.rel (0) target = $region13
    $region12: #{tpu_custom_call.1} parent=1 // pred_region
      %s46 = ssub.s32 512, 512
      %47 = vsyncadd [#allocation6], %s46
      %s48 = sshll.u32 [#allocation7], 4
      %s49 = int_to_ptr.vmem [resolvable:$true] %s48
      %54 = dma.hbm_to_vmem [thread:$0]  %s2, 512, %s49, [#allocation6], 128, 128, 8
    $region13: #{tpu_custom_call.1} parent=1 // pred_fallthru
      _
    // Predicated region
    $region14: #{tpu_custom_call.1} parent=1 // pred_check
      _
    $region15: #{tpu_custom_call.1} parent=1 // pred_check_branch
      %56 = sbr.rel (0) target = $region17
    $region16: #{tpu_custom_call.1} parent=1 // pred_region
      %s58 = ssub.s32 2048, 2048
      %59 = vsyncadd [#allocation9], %s58
      %s60 = sshll.u32 [#allocation8], 4
      %s61 = int_to_ptr.vmem [resolvable:$true] %s60
      %66 = dma.hbm_to_vmem [thread:$0]  %s3, 2048, %s61, [#allocation9], 128, 128, 8
    $region17: #{tpu_custom_call.1} parent=1 // pred_fallthru
      _
    // Predicated region
    $region18: #{tpu_custom_call.1} parent=1 // pred_check
      _
    $region19: #{tpu_custom_call.1} parent=1 // pred_check_branch
      %68 = sbr.rel (0) target = $region21
    $region20: #{tpu_custom_call.1} parent=1 // pred_region
      _
    $region21: #{tpu_custom_call.1} parent=1 // pred_fallthru
      _
    // Predicated region
    $region22: #{tpu_custom_call.1} parent=1 // pred_check
      _
    $region23: #{tpu_custom_call.1} parent=1 // pred_check_branch
      %70 = sbr.rel (0) target = $region25
    $region24: #{tpu_custom_call.1} parent=1 // pred_region
      %s72 = ssub.s32 2048, 2048
      %73 = vsyncadd [#allocation9], %s72
      %s74 = sshll.u32 [#allocation10], 4
      %s75 = int_to_ptr.vmem [resolvable:$true] %s74
      %80 = dma.hbm_to_vmem [thread:$0]  %s5, 2048, %s75, [#allocation9], 128, 128, 8
    $region25: #{tpu_custom_call.1} parent=1 // pred_fallthru
      _
    // Predicated region
    $region26: #{tpu_custom_call.1} parent=1 // pred_check
      _
    $region27: #{tpu_custom_call.1} parent=1 // pred_check_branch
      %82 = sbr.rel (0) target = $region29
    $region28: #{tpu_custom_call.1} parent=1 // pred_region
      _
    $region29: #{tpu_custom_call.1} parent=1 // pred_fallthru
      _
    // Predicated region
    $region30: #{tpu_custom_call.1} parent=1 // pred_check
      _
    $region31: #{tpu_custom_call.1} parent=1 // pred_check_branch
      %84 = sbr.rel (0) target = $region33
    $region32: #{tpu_custom_call.1} parent=1 // pred_region
      %s86 = ssub.s32 2048, 2048
      %87 = vsyncadd [#allocation12], %s86
      %s88 = sshll.u32 [#allocation11], 4
      %s89 = int_to_ptr.vmem [resolvable:$true] %s88
      %94 = dma.hbm_to_vmem [thread:$0]  %s7, 2048, %s89, [#allocation12], 128, 128, 8
    $region33: #{tpu_custom_call.1} parent=1 // pred_fallthru
      _
    // Predicated region
    $region34: #{tpu_custom_call.1} parent=1 // pred_check
      _
    $region35: #{tpu_custom_call.1} parent=1 // pred_check_branch
      %96 = sbr.rel (0) target = $region37
    $region36: #{tpu_custom_call.1} parent=1 // pred_region
      _
    $region37: #{tpu_custom_call.1} parent=1 // pred_fallthru
      _
    // Predicated region
    $region38: #{tpu_custom_call.1} parent=1 // pred_check
      _
    $region39: #{tpu_custom_call.1} parent=1 // pred_check_branch
      %98 = sbr.rel (0) target = $region41
    $region40: #{tpu_custom_call.1} parent=1 // pred_region
      %99 = dma.done [#allocation3], 512
    $region41: #{tpu_custom_call.1} parent=1 // pred_fallthru
      _
    // Predicated region
    $region42: #{tpu_custom_call.1} parent=1 // pred_check
      _
    $region43: #{tpu_custom_call.1} parent=1 // pred_check_branch
      %101 = sbr.rel (0) target = $region45
    $region44: #{tpu_custom_call.1} parent=1 // pred_region
      %102 = dma.done [#allocation6], 512
    $region45: #{tpu_custom_call.1} parent=1 // pred_fallthru
      _
    // Predicated region
    $region46: #{tpu_custom_call.1} parent=1 // pred_check
      _
    $region47: #{tpu_custom_call.1} parent=1 // pred_check_branch
      %104 = sbr.rel (0) target = $region49
    $region48: #{tpu_custom_call.1} parent=1 // pred_region
      %105 = dma.done [#allocation6], 512
    $region49: #{tpu_custom_call.1} parent=1 // pred_fallthru
      _
    // Predicated region
    $region50: #{tpu_custom_call.1} parent=1 // pred_check
      _
    $region51: #{tpu_custom_call.1} parent=1 // pred_check_branch
      %107 = sbr.rel (0) target = $region53
    $region52: #{tpu_custom_call.1} parent=1 // pred_region
      %108 = dma.done [#allocation9], 2048
    $region53: #{tpu_custom_call.1} parent=1 // pred_fallthru
      _
    // Predicated region
    $region54: #{tpu_custom_call.1} parent=1 // pred_check
      _
    $region55: #{tpu_custom_call.1} parent=1 // pred_check_branch
      %110 = sbr.rel (0) target = $region57
    $region56: #{tpu_custom_call.1} parent=1 // pred_region
      %111 = dma.done [#allocation9], 2048
    $region57: #{tpu_custom_call.1} parent=1 // pred_fallthru
      _
    // Predicated region
    $region58: #{tpu_custom_call.1} parent=1 // pred_check
      _
    $region59: #{tpu_custom_call.1} parent=1 // pred_check_branch
      %113 = sbr.rel (0) target = $region61
    $region60: #{tpu_custom_call.1} parent=1 // pred_region
      %114 = dma.done [#allocation12], 2048
    $region61: #{tpu_custom_call.1} parent=1 // pred_fallthru
      _
    %v115 = vld [vmem:[#allocation2] sm:$0xff]
    %v116 = vld [vmem:[#allocation2 + $0x8] sm:$0xff]
    %v117 = vld [vmem:[#allocation2 + $0x10] sm:$0xff]
    %v118 = vld [vmem:[#allocation2 + $0x18] sm:$0xff]
    %v119 = vld [vmem:[#allocation8] sm:$0xff]
    %v120 = vld [vmem:[#allocation8 + $0x8] sm:$0xff]
    %v121 = vld [vmem:[#allocation8 + $0x10] sm:$0xff]
    %v122 = vld [vmem:[#allocation8 + $0x18] sm:$0xff]
    %v123 = vld [vmem:[#allocation8 + $0x20] sm:$0xff]
    %v124 = vld [vmem:[#allocation8 + $0x28] sm:$0xff]
    %v125 = vld [vmem:[#allocation8 + $0x30] sm:$0xff]
    %v126 = vld [vmem:[#allocation8 + $0x38] sm:$0xff]
    %v127 = vld [vmem:[#allocation8 + $0x40] sm:$0xff]
    %v128 = vld [vmem:[#allocation8 + $0x48] sm:$0xff]
    %v129 = vld [vmem:[#allocation8 + $0x50] sm:$0xff]
    %v130 = vld [vmem:[#allocation8 + $0x58] sm:$0xff]
    %v131 = vld [vmem:[#allocation8 + $0x60] sm:$0xff]
    %v132 = vld [vmem:[#allocation8 + $0x68] sm:$0xff]
    %v133 = vld [vmem:[#allocation8 + $0x70] sm:$0xff]
    %v134 = vld [vmem:[#allocation8 + $0x78] sm:$0xff]
    %v135 = vld [vmem:[%s4] sm:$0x1]
    %v137 = vlaneseq
    %v138 = vshrl.u32 %v137, 7
    %v139 = vsub.s32 0, %v138
    %v140 = vrot.slane %v135, %v139
    %142 = vmatprep.subr.mxu0 0.0
    %143 = vmatpush1.msra.mxu0 %v119
    %144 = vmatprep.subr.mxu0 0.0
    %145 = vmatpush1.msra.mxu0 %v120
    %146 = vmatprep.subr.mxu0 0.0
    %147 = vmatpush1.msra.mxu0 %v121
    %148 = vmatprep.subr.mxu0 0.0
    %149 = vmatpush1.msra.mxu0 %v122
    %150 = vmatprep.subr.mxu0 0.0
    %151 = vmatpush1.msra.mxu0 %v123
    %152 = vmatprep.subr.mxu0 0.0
    %153 = vmatpush1.msra.mxu0 %v124
    %154 = vmatprep.subr.mxu0 0.0
    %155 = vmatpush1.msra.mxu0 %v125
    %156 = vmatprep.subr.mxu0 0.0
    %157 = vmatpush1.msra.mxu0 %v126
    %158 = vmatprep.subr.mxu0 0.0
    %159 = vmatpush1.msra.mxu0 %v127
    %160 = vmatprep.subr.mxu0 0.0
    %161 = vmatpush1.msra.mxu0 %v128
    %162 = vmatprep.subr.mxu0 0.0
    %163 = vmatpush1.msra.mxu0 %v129
    %164 = vmatprep.subr.mxu0 0.0
    %165 = vmatpush1.msra.mxu0 %v130
    %166 = vmatprep.subr.mxu0 0.0
    %167 = vmatpush1.msra.mxu0 %v131
    %168 = vmatprep.subr.mxu0 0.0
    %169 = vmatpush1.msra.mxu0 %v132
    %170 = vmatprep.subr.mxu0 0.0
    %171 = vmatpush1.msra.mxu0 %v133
    %172 = vmatprep.subr.mxu0 0.0
    %173 = vmatpush1.msra.mxu0 %v134
    %174 = vmatprep.subr.mxu0 0.0
    %175 = vmatpush1.msra.mxu0 0.0
    %176 = vmatprep.subr.mxu0 0.0
    %177 = vmatpush1.msra.mxu0 0.0
    %178 = vmatprep.subr.mxu0 0.0
    %179 = vmatpush1.msra.mxu0 0.0
    %180 = vmatprep.subr.mxu0 0.0
    %181 = vmatpush1.msra.mxu0 0.0
    %182 = vmatprep.subr.mxu0 0.0
    %183 = vmatpush1.msra.mxu0 0.0
    %184 = vmatprep.subr.mxu0 0.0
    %185 = vmatpush1.msra.mxu0 0.0
    %186 = vmatprep.subr.mxu0 0.0
    %187 = vmatpush1.msra.mxu0 0.0
    %188 = vmatprep.subr.mxu0 0.0
    %189 = vmatpush1.msra.mxu0 0.0
    %190 = vmatprep.subr.mxu0 0.0
    %191 = vmatpush1.msra.mxu0 0.0
    %192 = vmatprep.subr.mxu0 0.0
    %193 = vmatpush1.msra.mxu0 0.0
    %194 = vmatprep.subr.mxu0 0.0
    %195 = vmatpush1.msra.mxu0 0.0
    %196 = vmatprep.subr.mxu0 0.0
    %197 = vmatpush1.msra.mxu0 0.0
    %198 = vmatprep.subr.mxu0 0.0
    %199 = vmatpush1.msra.mxu0 0.0
    %200 = vmatprep.subr.mxu0 0.0
    %201 = vmatpush1.msra.mxu0 0.0
    %202 = vmatprep.subr.mxu0 0.0
    %203 = vmatpush1.msra.mxu0 0.0
    %204 = vmatprep.subr.mxu0 0.0
    %205 = vmatpush1.msra.mxu0 0.0
    %206 = vmatprep.mubr.f32.mxu0 0.0
    %207 = vmatmul.mubr.f32.gmra.mrb[0].mxu0 %v115
    %v208 = vpop.f32.mrb[0].mxu0
    %v209 = vadd.f32 %v140, %v208
    %v210 = vpop.f32.mrb[0].mxu0
    %211 = vmatprep.mubr.f32.mxu0 0.0
    %212 = vmatmul.mubr.f32.gmra.mrb[0].mxu0 %v116
    %v213 = vpop.f32.mrb[0].mxu0
    %v214 = vadd.f32 %v140, %v213
    %v215 = vpop.f32.mrb[0].mxu0
    %216 = vmatprep.mubr.f32.mxu0 0.0
    %217 = vmatmul.mubr.f32.gmra.mrb[0].mxu0 %v117
    %v218 = vpop.f32.mrb[0].mxu0
    %v219 = vadd.f32 %v140, %v218
    %v220 = vpop.f32.mrb[0].mxu0
    %221 = vmatprep.mubr.f32.mxu0 0.0
    %222 = vmatmul.mubr.f32.gmra.mrb[0].mxu0 %v118
    %v223 = vpop.f32.mrb[0].mxu0
    %v224 = vadd.f32 %v140, %v223
    %v225 = vpop.f32.mrb[0].mxu0
    %226 = vdwg.mxu0
    %v227 = vld [vmem:[#allocation5] sm:$0xff]
    %v228 = vld [vmem:[#allocation5 + $0x8] sm:$0xff]
    %v229 = vld [vmem:[#allocation5 + $0x10] sm:$0xff]
    %v230 = vld [vmem:[#allocation5 + $0x18] sm:$0xff]
    %v231 = vld [vmem:[#allocation10] sm:$0xff]
    %v232 = vld [vmem:[#allocation10 + $0x8] sm:$0xff]
    %v233 = vld [vmem:[#allocation10 + $0x10] sm:$0xff]
    %v234 = vld [vmem:[#allocation10 + $0x18] sm:$0xff]
    %v235 = vld [vmem:[#allocation10 + $0x20] sm:$0xff]
    %v236 = vld [vmem:[#allocation10 + $0x28] sm:$0xff]
    %v237 = vld [vmem:[#allocation10 + $0x30] sm:$0xff]
    %v238 = vld [vmem:[#allocation10 + $0x38] sm:$0xff]
    %v239 = vld [vmem:[#allocation10 + $0x40] sm:$0xff]
    %v240 = vld [vmem:[#allocation10 + $0x48] sm:$0xff]
    %v241 = vld [vmem:[#allocation10 + $0x50] sm:$0xff]
    %v242 = vld [vmem:[#allocation10 + $0x58] sm:$0xff]
    %v243 = vld [vmem:[#allocation10 + $0x60] sm:$0xff]
    %v244 = vld [vmem:[#allocation10 + $0x68] sm:$0xff]
    %v245 = vld [vmem:[#allocation10 + $0x70] sm:$0xff]
    %v246 = vld [vmem:[#allocation10 + $0x78] sm:$0xff]
    %v247 = vld [vmem:[%s6] sm:$0x1]
    %v249 = vlaneseq
    %v250 = vshrl.u32 %v249, 7
    %v251 = vsub.s32 0, %v250
    %v252 = vrot.slane %v247, %v251
    %254 = vmatprep.subr.mxu0 0.0
    %255 = vmatpush1.msra.mxu0 %v231
    %256 = vmatprep.subr.mxu0 0.0
    %257 = vmatpush1.msra.mxu0 %v232
    %258 = vmatprep.subr.mxu0 0.0
    %259 = vmatpush1.msra.mxu0 %v233
    %260 = vmatprep.subr.mxu0 0.0
    %261 = vmatpush1.msra.mxu0 %v234
    %262 = vmatprep.subr.mxu0 0.0
    %263 = vmatpush1.msra.mxu0 %v235
    %264 = vmatprep.subr.mxu0 0.0
    %265 = vmatpush1.msra.mxu0 %v236
    %266 = vmatprep.subr.mxu0 0.0
    %267 = vmatpush1.msra.mxu0 %v237
    %268 = vmatprep.subr.mxu0 0.0
    %269 = vmatpush1.msra.mxu0 %v238
    %270 = vmatprep.subr.mxu0 0.0
    %271 = vmatpush1.msra.mxu0 %v239
    %272 = vmatprep.subr.mxu0 0.0
    %273 = vmatpush1.msra.mxu0 %v240
    %274 = vmatprep.subr.mxu0 0.0
    %275 = vmatpush1.msra.mxu0 %v241
    %276 = vmatprep.subr.mxu0 0.0
    %277 = vmatpush1.msra.mxu0 %v242
    %278 = vmatprep.subr.mxu0 0.0
    %279 = vmatpush1.msra.mxu0 %v243
    %280 = vmatprep.subr.mxu0 0.0
    %281 = vmatpush1.msra.mxu0 %v244
    %282 = vmatprep.subr.mxu0 0.0
    %283 = vmatpush1.msra.mxu0 %v245
    %284 = vmatprep.subr.mxu0 0.0
    %285 = vmatpush1.msra.mxu0 %v246
    %286 = vmatprep.subr.mxu0 0.0
    %287 = vmatpush1.msra.mxu0 0.0
    %288 = vmatprep.subr.mxu0 0.0
    %289 = vmatpush1.msra.mxu0 0.0
    %290 = vmatprep.subr.mxu0 0.0
    %291 = vmatpush1.msra.mxu0 0.0
    %292 = vmatprep.subr.mxu0 0.0
    %293 = vmatpush1.msra.mxu0 0.0
    %294 = vmatprep.subr.mxu0 0.0
    %295 = vmatpush1.msra.mxu0 0.0
    %296 = vmatprep.subr.mxu0 0.0
    %297 = vmatpush1.msra.mxu0 0.0
    %298 = vmatprep.subr.mxu0 0.0
    %299 = vmatpush1.msra.mxu0 0.0
    %300 = vmatprep.subr.mxu0 0.0
    %301 = vmatpush1.msra.mxu0 0.0
    %302 = vmatprep.subr.mxu0 0.0
    %303 = vmatpush1.msra.mxu0 0.0
    %304 = vmatprep.subr.mxu0 0.0
    %305 = vmatpush1.msra.mxu0 0.0
    %306 = vmatprep.subr.mxu0 0.0
    %307 = vmatpush1.msra.mxu0 0.0
    %308 = vmatprep.subr.mxu0 0.0
    %309 = vmatpush1.msra.mxu0 0.0
    %310 = vmatprep.subr.mxu0 0.0
    %311 = vmatpush1.msra.mxu0 0.0
    %312 = vmatprep.subr.mxu0 0.0
    %313 = vmatpush1.msra.mxu0 0.0
    %314 = vmatprep.subr.mxu0 0.0
    %315 = vmatpush1.msra.mxu0 0.0
    %316 = vmatprep.subr.mxu0 0.0
    %317 = vmatpush1.msra.mxu0 0.0
    %318 = vmatprep.mubr.f32.mxu0 0.0
    %319 = vmatmul.mubr.f32.gmra.mrb[0].mxu0 %v227
    %v320 = vpop.f32.mrb[0].mxu0
    %v321 = vadd.f32 %v252, %v320
    %v322 = vpop.f32.mrb[0].mxu0
    %323 = vmatprep.mubr.f32.mxu0 0.0
    %324 = vmatmul.mubr.f32.gmra.mrb[0].mxu0 %v228
    %v325 = vpop.f32.mrb[0].mxu0
    %v326 = vadd.f32 %v252, %v325
    %v327 = vpop.f32.mrb[0].mxu0
    %328 = vmatprep.mubr.f32.mxu0 0.0
    %329 = vmatmul.mubr.f32.gmra.mrb[0].mxu0 %v229
    %v330 = vpop.f32.mrb[0].mxu0
    %v331 = vadd.f32 %v252, %v330
    %v332 = vpop.f32.mrb[0].mxu0
    %333 = vmatprep.mubr.f32.mxu0 0.0
    %334 = vmatmul.mubr.f32.gmra.mrb[0].mxu0 %v230
    %v335 = vpop.f32.mrb[0].mxu0
    %v336 = vadd.f32 %v252, %v335
    %v337 = vpop.f32.mrb[0].mxu0
    %338 = vdwg.mxu0
    %v339 = vld [vmem:[#allocation7] sm:$0xff]
    %v340 = vld [vmem:[#allocation7 + $0x8] sm:$0xff]
    %v341 = vld [vmem:[#allocation7 + $0x10] sm:$0xff]
    %v342 = vld [vmem:[#allocation7 + $0x18] sm:$0xff]
    %v343 = vld [vmem:[#allocation11] sm:$0xff]
    %v344 = vld [vmem:[#allocation11 + $0x8] sm:$0xff]
    %v345 = vld [vmem:[#allocation11 + $0x10] sm:$0xff]
    %v346 = vld [vmem:[#allocation11 + $0x18] sm:$0xff]
    %v347 = vld [vmem:[#allocation11 + $0x20] sm:$0xff]
    %v348 = vld [vmem:[#allocation11 + $0x28] sm:$0xff]
    %v349 = vld [vmem:[#allocation11 + $0x30] sm:$0xff]
    %v350 = vld [vmem:[#allocation11 + $0x38] sm:$0xff]
    %v351 = vld [vmem:[#allocation11 + $0x40] sm:$0xff]
    %v352 = vld [vmem:[#allocation11 + $0x48] sm:$0xff]
    %v353 = vld [vmem:[#allocation11 + $0x50] sm:$0xff]
    %v354 = vld [vmem:[#allocation11 + $0x58] sm:$0xff]
    %v355 = vld [vmem:[#allocation11 + $0x60] sm:$0xff]
    %v356 = vld [vmem:[#allocation11 + $0x68] sm:$0xff]
    %v357 = vld [vmem:[#allocation11 + $0x70] sm:$0xff]
    %v358 = vld [vmem:[#allocation11 + $0x78] sm:$0xff]
    %v359 = vld [vmem:[%s8] sm:$0x1]
    %v361 = vlaneseq
    %v362 = vshrl.u32 %v361, 7
    %v363 = vsub.s32 0, %v362
    %v364 = vrot.slane %v359, %v363
    %366 = vmatprep.subr.mxu0 0.0
    %367 = vmatpush1.msra.mxu0 %v343
    %368 = vmatprep.subr.mxu0 0.0
    %369 = vmatpush1.msra.mxu0 %v344
    %370 = vmatprep.subr.mxu0 0.0
    %371 = vmatpush1.msra.mxu0 %v345
    %372 = vmatprep.subr.mxu0 0.0
    %373 = vmatpush1.msra.mxu0 %v346
    %374 = vmatprep.subr.mxu0 0.0
    %375 = vmatpush1.msra.mxu0 %v347
    %376 = vmatprep.subr.mxu0 0.0
    %377 = vmatpush1.msra.mxu0 %v348
    %378 = vmatprep.subr.mxu0 0.0
    %379 = vmatpush1.msra.mxu0 %v349
    %380 = vmatprep.subr.mxu0 0.0
    %381 = vmatpush1.msra.mxu0 %v350
    %382 = vmatprep.subr.mxu0 0.0
    %383 = vmatpush1.msra.mxu0 %v351
    %384 = vmatprep.subr.mxu0 0.0
    %385 = vmatpush1.msra.mxu0 %v352
    %386 = vmatprep.subr.mxu0 0.0
    %387 = vmatpush1.msra.mxu0 %v353
    %388 = vmatprep.subr.mxu0 0.0
    %389 = vmatpush1.msra.mxu0 %v354
    %390 = vmatprep.subr.mxu0 0.0
    %391 = vmatpush1.msra.mxu0 %v355
    %392 = vmatprep.subr.mxu0 0.0
    %393 = vmatpush1.msra.mxu0 %v356
    %394 = vmatprep.subr.mxu0 0.0
    %395 = vmatpush1.msra.mxu0 %v357
    %396 = vmatprep.subr.mxu0 0.0
    %397 = vmatpush1.msra.mxu0 %v358
    %398 = vmatprep.subr.mxu0 0.0
    %399 = vmatpush1.msra.mxu0 0.0
    %400 = vmatprep.subr.mxu0 0.0
    %401 = vmatpush1.msra.mxu0 0.0
    %402 = vmatprep.subr.mxu0 0.0
    %403 = vmatpush1.msra.mxu0 0.0
    %404 = vmatprep.subr.mxu0 0.0
    %405 = vmatpush1.msra.mxu0 0.0
    %406 = vmatprep.subr.mxu0 0.0
    %407 = vmatpush1.msra.mxu0 0.0
    %408 = vmatprep.subr.mxu0 0.0
    %409 = vmatpush1.msra.mxu0 0.0
    %410 = vmatprep.subr.mxu0 0.0
    %411 = vmatpush1.msra.mxu0 0.0
    %412 = vmatprep.subr.mxu0 0.0
    %413 = vmatpush1.msra.mxu0 0.0
    %414 = vmatprep.subr.mxu0 0.0
    %415 = vmatpush1.msra.mxu0 0.0
    %416 = vmatprep.subr.mxu0 0.0
    %417 = vmatpush1.msra.mxu0 0.0
    %418 = vmatprep.subr.mxu0 0.0
    %419 = vmatpush1.msra.mxu0 0.0
    %420 = vmatprep.subr.mxu0 0.0
    %421 = vmatpush1.msra.mxu0 0.0
    %422 = vmatprep.subr.mxu0 0.0
    %423 = vmatpush1.msra.mxu0 0.0
    %424 = vmatprep.subr.mxu0 0.0
    %425 = vmatpush1.msra.mxu0 0.0
    %426 = vmatprep.subr.mxu0 0.0
    %427 = vmatpush1.msra.mxu0 0.0
    %428 = vmatprep.subr.mxu0 0.0
    %429 = vmatpush1.msra.mxu0 0.0
    %430 = vmatprep.mubr.f32.mxu0 0.0
    %431 = vmatmul.mubr.f32.gmra.mrb[0].mxu0 %v339
    %v432 = vpop.f32.mrb[0].mxu0
    %v433 = vadd.f32 %v364, %v432
    %v434 = vpop.f32.mrb[0].mxu0
    %435 = vmatprep.mubr.f32.mxu0 0.0
    %436 = vmatmul.mubr.f32.gmra.mrb[0].mxu0 %v340
    %v437 = vpop.f32.mrb[0].mxu0
    %v438 = vadd.f32 %v364, %v437
    %v439 = vpop.f32.mrb[0].mxu0
    %440 = vmatprep.mubr.f32.mxu0 0.0
    %441 = vmatmul.mubr.f32.gmra.mrb[0].mxu0 %v341
    %v442 = vpop.f32.mrb[0].mxu0
    %v443 = vadd.f32 %v364, %v442
    %v444 = vpop.f32.mrb[0].mxu0
    %445 = vmatprep.mubr.f32.mxu0 0.0
    %446 = vmatmul.mubr.f32.gmra.mrb[0].mxu0 %v342
    %v447 = vpop.f32.mrb[0].mxu0
    %v448 = vadd.f32 %v364, %v447
    %v449 = vpop.f32.mrb[0].mxu0
    %450 = vdwg.mxu0
    %v451 = vmul.f32 %v209, 0.25
    %v452 = vmul.f32 %v214, 0.25
    %v453 = vmul.f32 %v219, 0.25
    %v454 = vmul.f32 %v224, 0.25
    %455 = vmatprep.subr.mxu0 0.0
    %456 = vmatpush1.xpose.msra.mxu0 %v321
    %457 = vmatprep.subr.mxu0 0.0
    %458 = vmatpush1.xpose.msra.mxu0 0.0
    %459 = vmatprep.subr.mxu0 0.0
    %460 = vmatpush1.xpose.msra.mxu0 0.0
    %461 = vmatprep.subr.mxu0 0.0
    %462 = vmatpush1.xpose.msra.mxu0 0.0
    %463 = vmatprep.subr.mxu0 0.0
    %464 = vmatpush1.xpose.msra.mxu0 0.0
    %465 = vmatprep.subr.mxu0 0.0
    %466 = vmatpush1.xpose.msra.mxu0 0.0
    %467 = vmatprep.subr.mxu0 0.0
    %468 = vmatpush1.xpose.msra.mxu0 0.0
    %469 = vmatprep.subr.mxu0 0.0
    %470 = vmatpush1.xpose.msra.mxu0 0.0
    %471 = vmatprep.subr.mxu0 0.0
    %472 = vmatpush1.xpose.msra.mxu0 0.0
    %473 = vmatprep.subr.mxu0 0.0
    %474 = vmatpush1.xpose.msra.mxu0 0.0
    %475 = vmatprep.subr.mxu0 0.0
    %476 = vmatpush1.xpose.msra.mxu0 0.0
    %477 = vmatprep.subr.mxu0 0.0
    %478 = vmatpush1.xpose.msra.mxu0 0.0
    %479 = vmatprep.subr.mxu0 0.0
    %480 = vmatpush1.xpose.msra.mxu0 0.0
    %481 = vmatprep.subr.mxu0 0.0
    %482 = vmatpush1.xpose.msra.mxu0 0.0
    %483 = vmatprep.subr.mxu0 0.0
    %484 = vmatpush1.xpose.msra.mxu0 0.0
    %485 = vmatprep.subr.mxu0 0.0
    %486 = vmatpush1.xpose.msra.mxu0 0.0
    %487 = vmatprep.subr.mxu0 0.0
    %488 = vmatpush1.xpose.msra.mxu0 0.0
    %489 = vmatprep.subr.mxu0 0.0
    %490 = vmatpush1.xpose.msra.mxu0 0.0
    %491 = vmatprep.subr.mxu0 0.0
    %492 = vmatpush1.xpose.msra.mxu0 0.0
    %493 = vmatprep.subr.mxu0 0.0
    %494 = vmatpush1.xpose.msra.mxu0 0.0
    %495 = vmatprep.subr.mxu0 0.0
    %496 = vmatpush1.xpose.msra.mxu0 0.0
    %497 = vmatprep.subr.mxu0 0.0
    %498 = vmatpush1.xpose.msra.mxu0 0.0
    %499 = vmatprep.subr.mxu0 0.0
    %500 = vmatpush1.xpose.msra.mxu0 0.0
    %501 = vmatprep.subr.mxu0 0.0
    %502 = vmatpush1.xpose.msra.mxu0 0.0
    %503 = vmatprep.subr.mxu0 0.0
    %504 = vmatpush1.xpose.msra.mxu0 0.0
    %505 = vmatprep.subr.mxu0 0.0
    %506 = vmatpush1.xpose.msra.mxu0 0.0
    %507 = vmatprep.subr.mxu0 0.0
    %508 = vmatpush1.xpose.msra.mxu0 0.0
    %509 = vmatprep.subr.mxu0 0.0
    %510 = vmatpush1.xpose.msra.mxu0 0.0
    %511 = vmatprep.subr.mxu0 0.0
    %512 = vmatpush1.xpose.msra.mxu0 0.0
    %513 = vmatprep.subr.mxu0 0.0
    %514 = vmatpush1.xpose.msra.mxu0 0.0
    %515 = vmatprep.subr.mxu0 0.0
    %516 = vmatpush1.xpose.msra.mxu0 0.0
    %517 = vmatprep.subr.mxu0 0.0
    %518 = vmatpush1.xpose.msra.mxu0 0.0
    %519 = vmatprep.mubr.f32.mxu0 0.0
    %520 = vmatmul.mubr.f32.gmra.mrb[0].mxu0 %v451
    %v521 = vpop.f32.mrb[0].mxu0
    %v522 = vadd.f32 0.0, %v521
    %v523 = vpop.f32.mrb[0].mxu0
    %524 = vdwg.mxu0
    %525 = vmatprep.subr.mxu0 0.0
    %526 = vmatpush1.xpose.msra.mxu0 %v326
    %527 = vmatprep.subr.mxu0 0.0
    %528 = vmatpush1.xpose.msra.mxu0 0.0
    %529 = vmatprep.subr.mxu0 0.0
    %530 = vmatpush1.xpose.msra.mxu0 0.0
    %531 = vmatprep.subr.mxu0 0.0
    %532 = vmatpush1.xpose.msra.mxu0 0.0
    %533 = vmatprep.subr.mxu0 0.0
    %534 = vmatpush1.xpose.msra.mxu0 0.0
    %535 = vmatprep.subr.mxu0 0.0
    %536 = vmatpush1.xpose.msra.mxu0 0.0
    %537 = vmatprep.subr.mxu0 0.0
    %538 = vmatpush1.xpose.msra.mxu0 0.0
    %539 = vmatprep.subr.mxu0 0.0
    %540 = vmatpush1.xpose.msra.mxu0 0.0
    %541 = vmatprep.subr.mxu0 0.0
    %542 = vmatpush1.xpose.msra.mxu0 0.0
    %543 = vmatprep.subr.mxu0 0.0
    %544 = vmatpush1.xpose.msra.mxu0 0.0
    %545 = vmatprep.subr.mxu0 0.0
    %546 = vmatpush1.xpose.msra.mxu0 0.0
    %547 = vmatprep.subr.mxu0 0.0
    %548 = vmatpush1.xpose.msra.mxu0 0.0
    %549 = vmatprep.subr.mxu0 0.0
    %550 = vmatpush1.xpose.msra.mxu0 0.0
    %551 = vmatprep.subr.mxu0 0.0
    %552 = vmatpush1.xpose.msra.mxu0 0.0
    %553 = vmatprep.subr.mxu0 0.0
    %554 = vmatpush1.xpose.msra.mxu0 0.0
    %555 = vmatprep.subr.mxu0 0.0
    %556 = vmatpush1.xpose.msra.mxu0 0.0
    %557 = vmatprep.subr.mxu0 0.0
    %558 = vmatpush1.xpose.msra.mxu0 0.0
    %559 = vmatprep.subr.mxu0 0.0
    %560 = vmatpush1.xpose.msra.mxu0 0.0
    %561 = vmatprep.subr.mxu0 0.0
    %562 = vmatpush1.xpose.msra.mxu0 0.0
    %563 = vmatprep.subr.mxu0 0.0
    %564 = vmatpush1.xpose.msra.mxu0 0.0
    %565 = vmatprep.subr.mxu0 0.0
    %566 = vmatpush1.xpose.msra.mxu0 0.0
    %567 = vmatprep.subr.mxu0 0.0
    %568 = vmatpush1.xpose.msra.mxu0 0.0
    %569 = vmatprep.subr.mxu0 0.0
    %570 = vmatpush1.xpose.msra.mxu0 0.0
    %571 = vmatprep.subr.mxu0 0.0
    %572 = vmatpush1.xpose.msra.mxu0 0.0
    %573 = vmatprep.subr.mxu0 0.0
    %574 = vmatpush1.xpose.msra.mxu0 0.0
    %575 = vmatprep.subr.mxu0 0.0
    %576 = vmatpush1.xpose.msra.mxu0 0.0
    %577 = vmatprep.subr.mxu0 0.0
    %578 = vmatpush1.xpose.msra.mxu0 0.0
    %579 = vmatprep.subr.mxu0 0.0
    %580 = vmatpush1.xpose.msra.mxu0 0.0
    %581 = vmatprep.subr.mxu0 0.0
    %582 = vmatpush1.xpose.msra.mxu0 0.0
    %583 = vmatprep.subr.mxu0 0.0
    %584 = vmatpush1.xpose.msra.mxu0 0.0
    %585 = vmatprep.subr.mxu0 0.0
    %586 = vmatpush1.xpose.msra.mxu0 0.0
    %587 = vmatprep.subr.mxu0 0.0
    %588 = vmatpush1.xpose.msra.mxu0 0.0
    %589 = vmatprep.mubr.f32.mxu0 0.0
    %590 = vmatmul.mubr.f32.gmra.mrb[0].mxu0 %v452
    %v591 = vpop.f32.mrb[0].mxu0
    %v592 = vadd.f32 0.0, %v591
    %v593 = vpop.f32.mrb[0].mxu0
    %594 = vdwg.mxu0
    %595 = vmatprep.subr.mxu0 0.0
    %596 = vmatpush1.xpose.msra.mxu0 %v331
    %597 = vmatprep.subr.mxu0 0.0
    %598 = vmatpush1.xpose.msra.mxu0 0.0
    %599 = vmatprep.subr.mxu0 0.0
    %600 = vmatpush1.xpose.msra.mxu0 0.0
    %601 = vmatprep.subr.mxu0 0.0
    %602 = vmatpush1.xpose.msra.mxu0 0.0
    %603 = vmatprep.subr.mxu0 0.0
    %604 = vmatpush1.xpose.msra.mxu0 0.0
    %605 = vmatprep.subr.mxu0 0.0
    %606 = vmatpush1.xpose.msra.mxu0 0.0
    %607 = vmatprep.subr.mxu0 0.0
    %608 = vmatpush1.xpose.msra.mxu0 0.0
    %609 = vmatprep.subr.mxu0 0.0
    %610 = vmatpush1.xpose.msra.mxu0 0.0
    %611 = vmatprep.subr.mxu0 0.0
    %612 = vmatpush1.xpose.msra.mxu0 0.0
    %613 = vmatprep.subr.mxu0 0.0
    %614 = vmatpush1.xpose.msra.mxu0 0.0
    %615 = vmatprep.subr.mxu0 0.0
    %616 = vmatpush1.xpose.msra.mxu0 0.0
    %617 = vmatprep.subr.mxu0 0.0
    %618 = vmatpush1.xpose.msra.mxu0 0.0
    %619 = vmatprep.subr.mxu0 0.0
    %620 = vmatpush1.xpose.msra.mxu0 0.0
    %621 = vmatprep.subr.mxu0 0.0
    %622 = vmatpush1.xpose.msra.mxu0 0.0
    %623 = vmatprep.subr.mxu0 0.0
    %624 = vmatpush1.xpose.msra.mxu0 0.0
    %625 = vmatprep.subr.mxu0 0.0
    %626 = vmatpush1.xpose.msra.mxu0 0.0
    %627 = vmatprep.subr.mxu0 0.0
    %628 = vmatpush1.xpose.msra.mxu0 0.0
    %629 = vmatprep.subr.mxu0 0.0
    %630 = vmatpush1.xpose.msra.mxu0 0.0
    %631 = vmatprep.subr.mxu0 0.0
    %632 = vmatpush1.xpose.msra.mxu0 0.0
    %633 = vmatprep.subr.mxu0 0.0
    %634 = vmatpush1.xpose.msra.mxu0 0.0
    %635 = vmatprep.subr.mxu0 0.0
    %636 = vmatpush1.xpose.msra.mxu0 0.0
    %637 = vmatprep.subr.mxu0 0.0
    %638 = vmatpush1.xpose.msra.mxu0 0.0
    %639 = vmatprep.subr.mxu0 0.0
    %640 = vmatpush1.xpose.msra.mxu0 0.0
    %641 = vmatprep.subr.mxu0 0.0
    %642 = vmatpush1.xpose.msra.mxu0 0.0
    %643 = vmatprep.subr.mxu0 0.0
    %644 = vmatpush1.xpose.msra.mxu0 0.0
    %645 = vmatprep.subr.mxu0 0.0
    %646 = vmatpush1.xpose.msra.mxu0 0.0
    %647 = vmatprep.subr.mxu0 0.0
    %648 = vmatpush1.xpose.msra.mxu0 0.0
    %649 = vmatprep.subr.mxu0 0.0
    %650 = vmatpush1.xpose.msra.mxu0 0.0
    %651 = vmatprep.subr.mxu0 0.0
    %652 = vmatpush1.xpose.msra.mxu0 0.0
    %653 = vmatprep.subr.mxu0 0.0
    %654 = vmatpush1.xpose.msra.mxu0 0.0
    %655 = vmatprep.subr.mxu0 0.0
    %656 = vmatpush1.xpose.msra.mxu0 0.0
    %657 = vmatprep.subr.mxu0 0.0
    %658 = vmatpush1.xpose.msra.mxu0 0.0
    %659 = vmatprep.mubr.f32.mxu0 0.0
    %660 = vmatmul.mubr.f32.gmra.mrb[0].mxu0 %v453
    %v661 = vpop.f32.mrb[0].mxu0
    %v662 = vadd.f32 0.0, %v661
    %v663 = vpop.f32.mrb[0].mxu0
    %664 = vdwg.mxu0
    %665 = vmatprep.subr.mxu0 0.0
    %666 = vmatpush1.xpose.msra.mxu0 %v336
    %667 = vmatprep.subr.mxu0 0.0
    %668 = vmatpush1.xpose.msra.mxu0 0.0
    %669 = vmatprep.subr.mxu0 0.0
    %670 = vmatpush1.xpose.msra.mxu0 0.0
    %671 = vmatprep.subr.mxu0 0.0
    %672 = vmatpush1.xpose.msra.mxu0 0.0
    %673 = vmatprep.subr.mxu0 0.0
    %674 = vmatpush1.xpose.msra.mxu0 0.0
    %675 = vmatprep.subr.mxu0 0.0
    %676 = vmatpush1.xpose.msra.mxu0 0.0
    %677 = vmatprep.subr.mxu0 0.0
    %678 = vmatpush1.xpose.msra.mxu0 0.0
    %679 = vmatprep.subr.mxu0 0.0
    %680 = vmatpush1.xpose.msra.mxu0 0.0
    %681 = vmatprep.subr.mxu0 0.0
    %682 = vmatpush1.xpose.msra.mxu0 0.0
    %683 = vmatprep.subr.mxu0 0.0
    %684 = vmatpush1.xpose.msra.mxu0 0.0
    %685 = vmatprep.subr.mxu0 0.0
    %686 = vmatpush1.xpose.msra.mxu0 0.0
    %687 = vmatprep.subr.mxu0 0.0
    %688 = vmatpush1.xpose.msra.mxu0 0.0
    %689 = vmatprep.subr.mxu0 0.0
    %690 = vmatpush1.xpose.msra.mxu0 0.0
    %691 = vmatprep.subr.mxu0 0.0
    %692 = vmatpush1.xpose.msra.mxu0 0.0
    %693 = vmatprep.subr.mxu0 0.0
    %694 = vmatpush1.xpose.msra.mxu0 0.0
    %695 = vmatprep.subr.mxu0 0.0
    %696 = vmatpush1.xpose.msra.mxu0 0.0
    %697 = vmatprep.subr.mxu0 0.0
    %698 = vmatpush1.xpose.msra.mxu0 0.0
    %699 = vmatprep.subr.mxu0 0.0
    %700 = vmatpush1.xpose.msra.mxu0 0.0
    %701 = vmatprep.subr.mxu0 0.0
    %702 = vmatpush1.xpose.msra.mxu0 0.0
    %703 = vmatprep.subr.mxu0 0.0
    %704 = vmatpush1.xpose.msra.mxu0 0.0
    %705 = vmatprep.subr.mxu0 0.0
    %706 = vmatpush1.xpose.msra.mxu0 0.0
    %707 = vmatprep.subr.mxu0 0.0
    %708 = vmatpush1.xpose.msra.mxu0 0.0
    %709 = vmatprep.subr.mxu0 0.0
    %710 = vmatpush1.xpose.msra.mxu0 0.0
    %711 = vmatprep.subr.mxu0 0.0
    %712 = vmatpush1.xpose.msra.mxu0 0.0
    %713 = vmatprep.subr.mxu0 0.0
    %714 = vmatpush1.xpose.msra.mxu0 0.0
    %715 = vmatprep.subr.mxu0 0.0
    %716 = vmatpush1.xpose.msra.mxu0 0.0
    %717 = vmatprep.subr.mxu0 0.0
    %718 = vmatpush1.xpose.msra.mxu0 0.0
    %719 = vmatprep.subr.mxu0 0.0
    %720 = vmatpush1.xpose.msra.mxu0 0.0
    %721 = vmatprep.subr.mxu0 0.0
    %722 = vmatpush1.xpose.msra.mxu0 0.0
    %723 = vmatprep.subr.mxu0 0.0
    %724 = vmatpush1.xpose.msra.mxu0 0.0
    %725 = vmatprep.subr.mxu0 0.0
    %726 = vmatpush1.xpose.msra.mxu0 0.0
    %727 = vmatprep.subr.mxu0 0.0
    %728 = vmatpush1.xpose.msra.mxu0 0.0
    %729 = vmatprep.mubr.f32.mxu0 0.0
    %730 = vmatmul.mubr.f32.gmra.mrb[0].mxu0 %v454
    %v731 = vpop.f32.mrb[0].mxu0
    %v732 = vadd.f32 0.0, %v731
    %v733 = vpop.f32.mrb[0].mxu0
    %734 = vdwg.mxu0
    %vm735 = vcmask 64512
    %v736 = vsel %vm735, %v522, -inf
    %737 = vmax.xlane.f32.xlu0 %v736
    %v738 = vpop.xlane.xlu0 %737
    %v739 = vsel %vm735, %v592, -inf
    %740 = vmax.xlane.f32.xlu0 %v739
    %v741 = vpop.xlane.xlu0 %740
    %v742 = vsel %vm735, %v662, -inf
    %743 = vmax.xlane.f32.xlu0 %v742
    %v744 = vpop.xlane.xlu0 %743
    %v745 = vsel %vm735, %v732, -inf
    %746 = vmax.xlane.f32.xlu0 %v745
    %v747 = vpop.xlane.xlu0 %746
    %v748 = vsub.f32 %v522, %v738
    %v749 = vsub.f32 %v592, %v741
    %v750 = vsub.f32 %v662, %v744
    %v751 = vsub.f32 %v732, %v747
    %v752 = vmul.f32 %v748, 1.442695
    %v753 = vpow.pop %v752
    %v754 = vmul.f32 %v749, 1.442695
    %v755 = vpow.pop %v754
    %v756 = vmul.f32 %v750, 1.442695
    %v757 = vpow.pop %v756
    %v758 = vmul.f32 %v751, 1.442695
    %v759 = vpow.pop %v758
    %v760 = vsel %vm735, %v753, 0.0
    %761 = vadd.xlane.f32.xlu0 %v760
    %v762 = vpop.xlane.xlu0 %761
    %v763 = vsel %vm735, %v755, 0.0
    %764 = vadd.xlane.f32.xlu0 %v763
    %v765 = vpop.xlane.xlu0 %764
    %v766 = vsel %vm735, %v757, 0.0
    %767 = vadd.xlane.f32.xlu0 %v766
    %v768 = vpop.xlane.xlu0 %767
    %v769 = vsel %vm735, %v759, 0.0
    %770 = vadd.xlane.f32.xlu0 %v769
    %v771 = vpop.xlane.xlu0 %770
    %v772 = vrcp.pop %v762
    %v773 = vmul.f32 %v753, %v772
    %v774 = vrcp.pop %v765
    %v775 = vmul.f32 %v755, %v774
    %v776 = vrcp.pop %v768
    %v777 = vmul.f32 %v757, %v776
    %v778 = vrcp.pop %v771
    %v779 = vmul.f32 %v759, %v778
    %v781 = vsel %vm735, %v773, 0
    %783 = vmatprep.subr.mxu0 0.0
    %784 = vmatpush1.msra.mxu0 %v433
    %785 = vmatprep.subr.mxu0 0.0
    %786 = vmatpush1.msra.mxu0 0.0
    %787 = vmatprep.subr.mxu0 0.0
    %788 = vmatpush1.msra.mxu0 0.0
    %789 = vmatprep.subr.mxu0 0.0
    %790 = vmatpush1.msra.mxu0 0.0
    %791 = vmatprep.subr.mxu0 0.0
    %792 = vmatpush1.msra.mxu0 0.0
    %793 = vmatprep.subr.mxu0 0.0
    %794 = vmatpush1.msra.mxu0 0.0
    %795 = vmatprep.subr.mxu0 0.0
    %796 = vmatpush1.msra.mxu0 0.0
    %797 = vmatprep.subr.mxu0 0.0
    %798 = vmatpush1.msra.mxu0 0.0
    %799 = vmatprep.subr.mxu0 0.0
    %800 = vmatpush1.msra.mxu0 0.0
    %801 = vmatprep.subr.mxu0 0.0
    %802 = vmatpush1.msra.mxu0 0.0
    %803 = vmatprep.subr.mxu0 0.0
    %804 = vmatpush1.msra.mxu0 0.0
    %805 = vmatprep.subr.mxu0 0.0
    %806 = vmatpush1.msra.mxu0 0.0
    %807 = vmatprep.subr.mxu0 0.0
    %808 = vmatpush1.msra.mxu0 0.0
    %809 = vmatprep.subr.mxu0 0.0
    %810 = vmatpush1.msra.mxu0 0.0
    %811 = vmatprep.subr.mxu0 0.0
    %812 = vmatpush1.msra.mxu0 0.0
    %813 = vmatprep.subr.mxu0 0.0
    %814 = vmatpush1.msra.mxu0 0.0
    %815 = vmatprep.subr.mxu0 0.0
    %816 = vmatpush1.msra.mxu0 0.0
    %817 = vmatprep.subr.mxu0 0.0
    %818 = vmatpush1.msra.mxu0 0.0
    %819 = vmatprep.subr.mxu0 0.0
    %820 = vmatpush1.msra.mxu0 0.0
    %821 = vmatprep.subr.mxu0 0.0
    %822 = vmatpush1.msra.mxu0 0.0
    %823 = vmatprep.subr.mxu0 0.0
    %824 = vmatpush1.msra.mxu0 0.0
    %825 = vmatprep.subr.mxu0 0.0
    %826 = vmatpush1.msra.mxu0 0.0
    %827 = vmatprep.subr.mxu0 0.0
    %828 = vmatpush1.msra.mxu0 0.0
    %829 = vmatprep.subr.mxu0 0.0
    %830 = vmatpush1.msra.mxu0 0.0
    %831 = vmatprep.subr.mxu0 0.0
    %832 = vmatpush1.msra.mxu0 0.0
    %833 = vmatprep.subr.mxu0 0.0
    %834 = vmatpush1.msra.mxu0 0.0
    %835 = vmatprep.subr.mxu0 0.0
    %836 = vmatpush1.msra.mxu0 0.0
    %837 = vmatprep.subr.mxu0 0.0
    %838 = vmatpush1.msra.mxu0 0.0
    %839 = vmatprep.subr.mxu0 0.0
    %840 = vmatpush1.msra.mxu0 0.0
    %841 = vmatprep.subr.mxu0 0.0
    %842 = vmatpush1.msra.mxu0 0.0
    %843 = vmatprep.subr.mxu0 0.0
    %844 = vmatpush1.msra.mxu0 0.0
    %845 = vmatprep.subr.mxu0 0.0
    %846 = vmatpush1.msra.mxu0 0.0
    %847 = vmatprep.mubr.f32.mxu0 0.0
    %848 = vmatmul.mubr.f32.gmra.mrb[0].mxu0 %v781
    %v849 = vpop.f32.mrb[0].mxu0
    %v850 = vadd.f32 0.0, %v849
    %v851 = vpop.f32.mrb[0].mxu0
    %852 = vdwg.mxu0
    %v854 = vsel %vm735, %v775, 0
    %856 = vmatprep.subr.mxu0 0.0
    %857 = vmatpush1.msra.mxu0 %v438
    %858 = vmatprep.subr.mxu0 0.0
    %859 = vmatpush1.msra.mxu0 0.0
    %860 = vmatprep.subr.mxu0 0.0
    %861 = vmatpush1.msra.mxu0 0.0
    %862 = vmatprep.subr.mxu0 0.0
    %863 = vmatpush1.msra.mxu0 0.0
    %864 = vmatprep.subr.mxu0 0.0
    %865 = vmatpush1.msra.mxu0 0.0
    %866 = vmatprep.subr.mxu0 0.0
    %867 = vmatpush1.msra.mxu0 0.0
    %868 = vmatprep.subr.mxu0 0.0
    %869 = vmatpush1.msra.mxu0 0.0
    %870 = vmatprep.subr.mxu0 0.0
    %871 = vmatpush1.msra.mxu0 0.0
    %872 = vmatprep.subr.mxu0 0.0
    %873 = vmatpush1.msra.mxu0 0.0
    %874 = vmatprep.subr.mxu0 0.0
    %875 = vmatpush1.msra.mxu0 0.0
    %876 = vmatprep.subr.mxu0 0.0
    %877 = vmatpush1.msra.mxu0 0.0
    %878 = vmatprep.subr.mxu0 0.0
    %879 = vmatpush1.msra.mxu0 0.0
    %880 = vmatprep.subr.mxu0 0.0
    %881 = vmatpush1.msra.mxu0 0.0
    %882 = vmatprep.subr.mxu0 0.0
    %883 = vmatpush1.msra.mxu0 0.0
    %884 = vmatprep.subr.mxu0 0.0
    %885 = vmatpush1.msra.mxu0 0.0
    %886 = vmatprep.subr.mxu0 0.0
    %887 = vmatpush1.msra.mxu0 0.0
    %888 = vmatprep.subr.mxu0 0.0
    %889 = vmatpush1.msra.mxu0 0.0
    %890 = vmatprep.subr.mxu0 0.0
    %891 = vmatpush1.msra.mxu0 0.0
    %892 = vmatprep.subr.mxu0 0.0
    %893 = vmatpush1.msra.mxu0 0.0
    %894 = vmatprep.subr.mxu0 0.0
    %895 = vmatpush1.msra.mxu0 0.0
    %896 = vmatprep.subr.mxu0 0.0
    %897 = vmatpush1.msra.mxu0 0.0
    %898 = vmatprep.subr.mxu0 0.0
    %899 = vmatpush1.msra.mxu0 0.0
    %900 = vmatprep.subr.mxu0 0.0
    %901 = vmatpush1.msra.mxu0 0.0
    %902 = vmatprep.subr.mxu0 0.0
    %903 = vmatpush1.msra.mxu0 0.0
    %904 = vmatprep.subr.mxu0 0.0
    %905 = vmatpush1.msra.mxu0 0.0
    %906 = vmatprep.subr.mxu0 0.0
    %907 = vmatpush1.msra.mxu0 0.0
    %908 = vmatprep.subr.mxu0 0.0
    %909 = vmatpush1.msra.mxu0 0.0
    %910 = vmatprep.subr.mxu0 0.0
    %911 = vmatpush1.msra.mxu0 0.0
    %912 = vmatprep.subr.mxu0 0.0
    %913 = vmatpush1.msra.mxu0 0.0
    %914 = vmatprep.subr.mxu0 0.0
    %915 = vmatpush1.msra.mxu0 0.0
    %916 = vmatprep.subr.mxu0 0.0
    %917 = vmatpush1.msra.mxu0 0.0
    %918 = vmatprep.subr.mxu0 0.0
    %919 = vmatpush1.msra.mxu0 0.0
    %920 = vmatprep.mubr.f32.mxu0 0.0
    %921 = vmatmul.mubr.f32.gmra.mrb[0].mxu0 %v854
    %v922 = vpop.f32.mrb[0].mxu0
    %v923 = vadd.f32 0.0, %v922
    %v924 = vpop.f32.mrb[0].mxu0
    %925 = vdwg.mxu0
    %v927 = vsel %vm735, %v777, 0
    %929 = vmatprep.subr.mxu0 0.0
    %930 = vmatpush1.msra.mxu0 %v443
    %931 = vmatprep.subr.mxu0 0.0
    %932 = vmatpush1.msra.mxu0 0.0
    %933 = vmatprep.subr.mxu0 0.0
    %934 = vmatpush1.msra.mxu0 0.0
    %935 = vmatprep.subr.mxu0 0.0
    %936 = vmatpush1.msra.mxu0 0.0
    %937 = vmatprep.subr.mxu0 0.0
    %938 = vmatpush1.msra.mxu0 0.0
    %939 = vmatprep.subr.mxu0 0.0
    %940 = vmatpush1.msra.mxu0 0.0
    %941 = vmatprep.subr.mxu0 0.0
    %942 = vmatpush1.msra.mxu0 0.0
    %943 = vmatprep.subr.mxu0 0.0
    %944 = vmatpush1.msra.mxu0 0.0
    %945 = vmatprep.subr.mxu0 0.0
    %946 = vmatpush1.msra.mxu0 0.0
    %947 = vmatprep.subr.mxu0 0.0
    %948 = vmatpush1.msra.mxu0 0.0
    %949 = vmatprep.subr.mxu0 0.0
    %950 = vmatpush1.msra.mxu0 0.0
    %951 = vmatprep.subr.mxu0 0.0
    %952 = vmatpush1.msra.mxu0 0.0
    %953 = vmatprep.subr.mxu0 0.0
    %954 = vmatpush1.msra.mxu0 0.0
    %955 = vmatprep.subr.mxu0 0.0
    %956 = vmatpush1.msra.mxu0 0.0
    %957 = vmatprep.subr.mxu0 0.0
    %958 = vmatpush1.msra.mxu0 0.0
    %959 = vmatprep.subr.mxu0 0.0
    %960 = vmatpush1.msra.mxu0 0.0
    %961 = vmatprep.subr.mxu0 0.0
    %962 = vmatpush1.msra.mxu0 0.0
    %963 = vmatprep.subr.mxu0 0.0
    %964 = vmatpush1.msra.mxu0 0.0
    %965 = vmatprep.subr.mxu0 0.0
    %966 = vmatpush1.msra.mxu0 0.0
    %967 = vmatprep.subr.mxu0 0.0
    %968 = vmatpush1.msra.mxu0 0.0
    %969 = vmatprep.subr.mxu0 0.0
    %970 = vmatpush1.msra.mxu0 0.0
    %971 = vmatprep.subr.mxu0 0.0
    %972 = vmatpush1.msra.mxu0 0.0
    %973 = vmatprep.subr.mxu0 0.0
    %974 = vmatpush1.msra.mxu0 0.0
    %975 = vmatprep.subr.mxu0 0.0
    %976 = vmatpush1.msra.mxu0 0.0
    %977 = vmatprep.subr.mxu0 0.0
    %978 = vmatpush1.msra.mxu0 0.0
    %979 = vmatprep.subr.mxu0 0.0
    %980 = vmatpush1.msra.mxu0 0.0
    %981 = vmatprep.subr.mxu0 0.0
    %982 = vmatpush1.msra.mxu0 0.0
    %983 = vmatprep.subr.mxu0 0.0
    %984 = vmatpush1.msra.mxu0 0.0
    %985 = vmatprep.subr.mxu0 0.0
    %986 = vmatpush1.msra.mxu0 0.0
    %987 = vmatprep.subr.mxu0 0.0
    %988 = vmatpush1.msra.mxu0 0.0
    %989 = vmatprep.subr.mxu0 0.0
    %990 = vmatpush1.msra.mxu0 0.0
    %991 = vmatprep.subr.mxu0 0.0
    %992 = vmatpush1.msra.mxu0 0.0
    %993 = vmatprep.mubr.f32.mxu0 0.0
    %994 = vmatmul.mubr.f32.gmra.mrb[0].mxu0 %v927
    %v995 = vpop.f32.mrb[0].mxu0
    %v996 = vadd.f32 0.0, %v995
    %v997 = vpop.f32.mrb[0].mxu0
    %998 = vdwg.mxu0
    %v1000 = vsel %vm735, %v779, 0
    %1002 = vmatprep.subr.mxu0 0.0
    %1003 = vmatpush1.msra.mxu0 %v448
    %1004 = vmatprep.subr.mxu0 0.0
    %1005 = vmatpush1.msra.mxu0 0.0
    %1006 = vmatprep.subr.mxu0 0.0
    %1007 = vmatpush1.msra.mxu0 0.0
    %1008 = vmatprep.subr.mxu0 0.0
    %1009 = vmatpush1.msra.mxu0 0.0
    %1010 = vmatprep.subr.mxu0 0.0
    %1011 = vmatpush1.msra.mxu0 0.0
    %1012 = vmatprep.subr.mxu0 0.0
    %1013 = vmatpush1.msra.mxu0 0.0
    %1014 = vmatprep.subr.mxu0 0.0
    %1015 = vmatpush1.msra.mxu0 0.0
    %1016 = vmatprep.subr.mxu0 0.0
    %1017 = vmatpush1.msra.mxu0 0.0
    %1018 = vmatprep.subr.mxu0 0.0
    %1019 = vmatpush1.msra.mxu0 0.0
    %1020 = vmatprep.subr.mxu0 0.0
    %1021 = vmatpush1.msra.mxu0 0.0
    %1022 = vmatprep.subr.mxu0 0.0
    %1023 = vmatpush1.msra.mxu0 0.0
    %1024 = vmatprep.subr.mxu0 0.0
    %1025 = vmatpush1.msra.mxu0 0.0
    %1026 = vmatprep.subr.mxu0 0.0
    %1027 = vmatpush1.msra.mxu0 0.0
    %1028 = vmatprep.subr.mxu0 0.0
    %1029 = vmatpush1.msra.mxu0 0.0
    %1030 = vmatprep.subr.mxu0 0.0
    %1031 = vmatpush1.msra.mxu0 0.0
    %1032 = vmatprep.subr.mxu0 0.0
    %1033 = vmatpush1.msra.mxu0 0.0
    %1034 = vmatprep.subr.mxu0 0.0
    %1035 = vmatpush1.msra.mxu0 0.0
    %1036 = vmatprep.subr.mxu0 0.0
    %1037 = vmatpush1.msra.mxu0 0.0
    %1038 = vmatprep.subr.mxu0 0.0
    %1039 = vmatpush1.msra.mxu0 0.0
    %1040 = vmatprep.subr.mxu0 0.0
    %1041 = vmatpush1.msra.mxu0 0.0
    %1042 = vmatprep.subr.mxu0 0.0
    %1043 = vmatpush1.msra.mxu0 0.0
    %1044 = vmatprep.subr.mxu0 0.0
    %1045 = vmatpush1.msra.mxu0 0.0
    %1046 = vmatprep.subr.mxu0 0.0
    %1047 = vmatpush1.msra.mxu0 0.0
    %1048 = vmatprep.subr.mxu0 0.0
    %1049 = vmatpush1.msra.mxu0 0.0
    %1050 = vmatprep.subr.mxu0 0.0
    %1051 = vmatpush1.msra.mxu0 0.0
    %1052 = vmatprep.subr.mxu0 0.0
    %1053 = vmatpush1.msra.mxu0 0.0
    %1054 = vmatprep.subr.mxu0 0.0
    %1055 = vmatpush1.msra.mxu0 0.0
    %1056 = vmatprep.subr.mxu0 0.0
    %1057 = vmatpush1.msra.mxu0 0.0
    %1058 = vmatprep.subr.mxu0 0.0
    %1059 = vmatpush1.msra.mxu0 0.0
    %1060 = vmatprep.subr.mxu0 0.0
    %1061 = vmatpush1.msra.mxu0 0.0
    %1062 = vmatprep.subr.mxu0 0.0
    %1063 = vmatpush1.msra.mxu0 0.0
    %1064 = vmatprep.subr.mxu0 0.0
    %1065 = vmatpush1.msra.mxu0 0.0
    %1066 = vmatprep.mubr.f32.mxu0 0.0
    %1067 = vmatmul.mubr.f32.gmra.mrb[0].mxu0 %v1000
    %v1068 = vpop.f32.mrb[0].mxu0
    %v1069 = vadd.f32 0.0, %v1068
    %v1070 = vpop.f32.mrb[0].mxu0
    %1071 = vdwg.mxu0
    %1072 = vst [vmem:[#allocation13] sm:$0xff] %v850
    %1073 = vst [vmem:[#allocation13 + $0x8] sm:$0xff] %v923
    %1074 = vst [vmem:[#allocation13 + $0x10] sm:$0xff] %v996
    %1075 = vst [vmem:[#allocation13 + $0x18] sm:$0xff] %v1069
    // Predicated region
    $region62: #{tpu_custom_call.1} parent=1 // pred_check
      _
    $region63: #{tpu_custom_call.1} parent=1 // pred_check_branch
      %1077 = sbr.rel (0) target = $region65
    $region64: #{tpu_custom_call.1} parent=1 // pred_region
      %s1079 = ssub.s32 512, 512
      %1080 = vsyncadd [#allocation4], %s1079
      %s1081 = sshll.u32 [#allocation13], 4
      %s1082 = int_to_ptr.vmem [resolvable:$true] %s1081
      %1087 = dma.vmem_to_hbm [thread:$0]  %s1082, 512, %s9, [#allocation4], 128, 128, 8
    $region65: #{tpu_custom_call.1} parent=1 // pred_fallthru
      _
    // Predicated region
    $region66: #{tpu_custom_call.1} parent=1 // pred_check
      _
    $region67: #{tpu_custom_call.1} parent=1 // pred_check_branch
      %1089 = sbr.rel (0) target = $region69
    $region68: #{tpu_custom_call.1} parent=1 // pred_region
      %1090 = dma.done [#allocation4], 512
    $region69: #{tpu_custom_call.1} parent=1 // pred_fallthru
      _
    %1091 = vsyncpa [#allocation3], 1
    %1092 = vsyncpa [#allocation6], 1
    %1093 = vsyncpa [#allocation9], 1
    %1094 = vsyncpa [#allocation12], 1
    %1095 = vsyncpa [#allocation4], 1

</llo_original>
